<compile_context>
chip_gen: v6e
topology: v6e:2x2x1
jax: 0.10.0
libtpu: 0.0.40
codegen_flags: <defaults>
</compile_context>

<pallas_src>
import functools

import jax
import jax.numpy as jnp
from jax.experimental import pallas as pl
from jax.experimental.pallas import tpu as pltpu


def g2l_kernel(x_ref, wenct_ref, bencc_ref, wagg_ref, bagg_ref,
               wprop_ref, bprop_ref, o_ref, acc_ref, *, hw_total):
    # x_ref : (Bt, Cin, HW_tile) block, HW_tile in the lane (fast) dimension.
    # acc_ref: (Bt, Chid) f32 running sum of relu(conv(x)) over spatial tiles.
    j = pl.program_id(1)
    nj = pl.num_programs(1)

    @pl.when(j == 0)
    def _init():
        acc_ref[...] = jnp.zeros_like(acc_ref)

    x = x_ref[...].astype(jnp.float32)            # (Bt, Cin, HW_tile)
    wenc_t = wenct_ref[...]                       # (Chid, Cin) f32
    benc = bencc_ref[...]                         # (Chid, 1)   f32
    bt = x.shape[0]

    # ---- encoder (1x1 conv + ReLU) on the MXU + partial spatial pool ----
    # Per-batch (Chid, Cin) @ (Cin, HW_tile): K=Cin is mostly systolic padding,
    # but one MXU push covers a full lane tile regardless of Chid, and the VPU
    # only does bias + ReLU while the XLU handles the cross-lane pool reduce.
    rows = []
    for b in range(bt):                           # static unroll, Bt <= 8
        hb = jnp.dot(wenc_t, x[b], preferred_element_type=jnp.float32)
        hb = jnp.maximum(hb + benc, 0.0)          # (Chid, HW_tile)
        rows.append(jnp.sum(hb, axis=-1)[None, :])
    acc_ref[...] += jnp.concatenate(rows, axis=0)  # (Bt, Chid)

    # ---- finalize: mean pool + aggregator + propagator, once per batch block ----
    @pl.when(j == nj - 1)
    def _finalize():
        pooled = acc_ref[...] * (1.0 / hw_total)                       # (Bt, Chid)
        a = jnp.dot(pooled, wagg_ref[...], preferred_element_type=jnp.float32)
        a = jnp.maximum(a + bagg_ref[...], 0.0)                        # (Bt, Chid)
        out = jnp.dot(a, wprop_ref[...], preferred_element_type=jnp.float32)
        o_ref[...] = (out + bprop_ref[...]).astype(o_ref.dtype)


def _pick_batch_block(batch):
    # Sublane-legal batch block: a multiple of 8, or the full batch dim.
    if batch % 8 == 0 and batch > 8:
        return 8
    return batch


def _pick_hw_tile(hw, target):
    # Largest multiple of 128 that divides HW and is <= target; if HW is small
    # (or has no such divisor) fall back to the full spatial extent.
    if hw <= target:
        return hw
    t = (target // 128) * 128
    for cand in range(t, 0, -128):
        if hw % cand == 0:
            return cand
    return hw


def g2l_unit(x_nchw, params, *, block_b=None, hw_tile=None, hw_tile_target=2048):
    """x_nchw: (B, Cin, H, W).  Returns (B, Cout) float32.

    hw_tile_target ~2048 keeps the working set well under v7x's 64 MiB VMEM
    (32 MiB scoped default); raise to 4096-8192 on v5e/v6e (128 MiB VMEM),
    optionally together with CompilerParams(vmem_limit_bytes=...).
    """
    wenc, benc, wagg, bagg, wprop, bprop = params
    B, Cin, H, W = x_nchw.shape
    HW = H * W
    Chid = wenc.shape[1]
    Cout = wprop.shape[1]

    # Free, contiguous view: NCHW -> (B, Cin, H*W).  No transpose pass, no
    # wrapper-side dtype cast (stream the producer's dtype, upcast in-kernel).
    x = x_nchw.reshape(B, Cin, HW)

    # Weights pre-arranged so the kernel never moves data between lanes/sublanes.
    wenc_t = wenc.T                    # (Chid, Cin)
    benc_c = benc.reshape(Chid, 1)     # (Chid, 1)

    bt = block_b if block_b is not None else _pick_batch_block(B)
    assert B % bt == 0, "batch block must divide batch"
    tw = hw_tile if hw_tile is not None else _pick_hw_tile(HW, hw_tile_target)
    assert HW % tw == 0, "spatial tile must divide H*W"
    grid = (B // bt, HW // tw)

    # TODO(synk): sweep pipeline_mode=pl.Buffered(3) on the x BlockSpec for
    # small HW tiles (DMA-latency sensitive); cap depth on v7x (tight VMEM).
    grid_spec = pltpu.PrefetchScalarGridSpec(
        num_scalar_prefetch=0,
        grid=grid,
        in_specs=[
            pl.BlockSpec((bt, Cin, tw), lambda i, j: (i, 0, j)),   # x tile (lane=HW)
            pl.BlockSpec((Chid, Cin), lambda i, j: (0, 0)),        # W_enc^T
            pl.BlockSpec((Chid, 1), lambda i, j: (0, 0)),          # b_enc (column)
            pl.BlockSpec((Chid, Chid), lambda i, j: (0, 0)),       # W_agg
            pl.BlockSpec((1, Chid), lambda i, j: (0, 0)),          # b_agg
            pl.BlockSpec((Chid, Cout), lambda i, j: (0, 0)),       # W_prop
            pl.BlockSpec((1, Cout), lambda i, j: (0, 0)),          # b_prop
        ],
        out_specs=pl.BlockSpec((bt, Cout), lambda i, j: (i, 0)),
        scratch_shapes=[pltpu.VMEM((bt, Chid), jnp.float32)],      # pooled sum
    )

    bytes_in = (x.size * x.dtype.itemsize
                + 4 * (wenc.size + benc.size + wagg.size + bagg.size
                       + wprop.size + bprop.size))
    cost = pl.CostEstimate(
        flops=2 * B * HW * Cin * Chid + 2 * B * Chid * (Chid + Cout),
        transcendentals=0,
        bytes_accessed=bytes_in + 4 * B * Cout,
    )

    return pl.pallas_call(
        functools.partial(g2l_kernel, hw_total=float(HW)),
        out_shape=jax.ShapeDtypeStruct((B, Cout), jnp.float32),
        grid_spec=grid_spec,
        compiler_params=pltpu.CompilerParams(
            dimension_semantics=("parallel", "arbitrary")),
        cost_estimate=cost,
    )(x, wenc_t, benc_c, wagg, bagg, wprop, bprop)


def g2l_reference(x_nchw, params):
    """Pure-JAX reference with the PyTorch G2LUnit semantics."""
    wenc, benc, wagg, bagg, wprop, bprop = params
    B, Cin, H, W = x_nchw.shape
    x = x_nchw.reshape(B, Cin, H * W).astype(jnp.float32)
    h = jnp.einsum("bkp,kc->bcp", x, wenc,
                   precision=jax.lax.Precision.HIGHEST)          # encoder 1x1 conv
    h = jnp.maximum(h + benc.reshape(1, -1, 1), 0.0)
    pooled = h.mean(axis=-1)                                     # global avg pool
    a = jnp.maximum(pooled @ wagg + bagg, 0.0)                   # aggregator fc
    return a @ wprop + bprop                                     # propagator


if __name__ == "__main__":
    B, Cin, H, W = 2, 4, 16, 16
    Chid, Cout = 32, 32

    key = jax.random.PRNGKey(0)
    kx, k1, k2, k3, k4, k5, k6 = jax.random.split(key, 7)

    x = jax.random.normal(kx, (B, Cin, H, W), dtype=jnp.float32)
    wenc = jax.random.normal(k1, (Cin, Chid), dtype=jnp.float32) * 0.1
    benc = jax.random.normal(k2, (1, Chid), dtype=jnp.float32) * 0.1
    wagg = jax.random.normal(k3, (Chid, Chid), dtype=jnp.float32) * 0.1
    bagg = jax.random.normal(k4, (1, Chid), dtype=jnp.float32) * 0.1
    wprop = jax.random.normal(k5, (Chid, Cout), dtype=jnp.float32) * 0.1
    bprop = jax.random.normal(k6, (1, Cout), dtype=jnp.float32) * 0.1
    params = (wenc, benc, wagg, bagg, wprop, bprop)

    # hw_tile=128 forces 2 spatial grid steps so the running-sum accumulator
    # path (init / accumulate / finalize) is exercised even at toy shapes.
    out = jax.block_until_ready(g2l_unit(x, params, hw_tile=128))

    ref = g2l_reference(x, params)

    assert out.shape == (B, Cout), out.shape
    assert jnp.allclose(out, ref, atol=2e-3, rtol=2e-3), (
        "mismatch vs reference; max abs err = "
        f"{float(jnp.max(jnp.abs(out - ref)))}")

    print("KERNEL_OK")
</pallas_src>

<mosaic_0001>
module attributes {stable_mosaic.version = 11 : i64} {
  func.func @g2l_kernel(%arg0: i32, %arg1: i32, %arg2: memref<2x4x128xf32, #tpu.memory_space<vmem>>, %arg3: memref<32x4xf32, #tpu.memory_space<vmem>>, %arg4: memref<32x1xf32, #tpu.memory_space<vmem>>, %arg5: memref<32x32xf32, #tpu.memory_space<vmem>>, %arg6: memref<1x32xf32, #tpu.memory_space<vmem>>, %arg7: memref<32x32xf32, #tpu.memory_space<vmem>>, %arg8: memref<1x32xf32, #tpu.memory_space<vmem>>, %arg9: memref<2x32xf32, #tpu.memory_space<vmem>>, %arg10: memref<2x32xf32, #tpu.memory_space<vmem>>) attributes {dimension_semantics = [#tpu.dimension_semantics<parallel>, #tpu.dimension_semantics<arbitrary>], iteration_bounds = array<i64: 1, 2>, scalar_prefetch = 0 : i64, scratch_operands = 1 : i64, tpu.core_type = #tpu.core_type<tc>, window_params = [{transform_indices = @transform_0, window_bounds = array<i64: 2, 4, 128>}, {pipeline_mode = #tpu.pipeline_mode<synchronous>, transform_indices = @transform_1, window_bounds = array<i64: 32, 4>}, {pipeline_mode = #tpu.pipeline_mode<synchronous>, transform_indices = @transform_2, window_bounds = array<i64: 32, 1>}, {pipeline_mode = #tpu.pipeline_mode<synchronous>, transform_indices = @transform_3, window_bounds = array<i64: 32, 32>}, {pipeline_mode = #tpu.pipeline_mode<synchronous>, transform_indices = @transform_4, window_bounds = array<i64: 1, 32>}, {pipeline_mode = #tpu.pipeline_mode<synchronous>, transform_indices = @transform_5, window_bounds = array<i64: 32, 32>}, {pipeline_mode = #tpu.pipeline_mode<synchronous>, transform_indices = @transform_6, window_bounds = array<i64: 1, 32>}, {transform_indices = @transform_7, window_bounds = array<i64: 2, 32>}]} {
    %c0_i32 = arith.constant 0 : i32
    %0 = arith.cmpi eq, %arg1, %c0_i32 : i32
    %1 = arith.extui %0 : i1 to i32
    %c0_i32_0 = arith.constant 0 : i32
    %2 = arith.cmpi ne, %1, %c0_i32_0 : i32
    scf.if %2 {
      %cst_17 = arith.constant 0.000000e+00 : f32
      %31 = vector.broadcast %cst_17 : f32 to vector<2x32xf32>
      %c0_18 = arith.constant 0 : index
      %c0_19 = arith.constant 0 : index
      %32 = vector.load %arg10[%c0_18, %c0_19] : memref<2x32xf32, #tpu.memory_space<vmem>>, vector<2x32xf32>
      tpu.vector_store %arg10[%c0_18, %c0_19], %31 {strides = array<i32>} : memref<2x32xf32, #tpu.memory_space<vmem>>, vector<2x32xf32>,
    } else {
    }
    %c0 = arith.constant 0 : index
    %c0_1 = arith.constant 0 : index
    %c0_2 = arith.constant 0 : index
    %3 = vector.load %arg2[%c0, %c0_1, %c0_2] : memref<2x4x128xf32, #tpu.memory_space<vmem>>, vector<2x4x128xf32>
    %c0_3 = arith.constant 0 : index
    %c0_4 = arith.constant 0 : index
    %4 = vector.load %arg3[%c0_3, %c0_4] : memref<32x4xf32, #tpu.memory_space<vmem>>, vector<32x4xf32>
    %c0_5 = arith.constant 0 : index
    %c0_6 = arith.constant 0 : index
    %5 = vector.load %arg4[%c0_5, %c0_6] : memref<32x1xf32, #tpu.memory_space<vmem>>, vector<32x1xf32>
    %6 = vector.extract_strided_slice %3 {offsets = [0, 0, 0], sizes = [1, 4, 128], strides = [1, 1, 1]} : vector<2x4x128xf32> to vector<1x4x128xf32>
    %7 = vector.shape_cast %6 : vector<1x4x128xf32> to vector<4x128xf32>
    %cst = arith.constant dense<0.000000e+00> : vector<32x128xf32>
    %8 = tpu.matmul %4, %7, %cst {dimension_numbers = #tpu.dot_dimension_numbers<[1], [0], [0], [1], [0, 0, 1, 1], [], []>} : vector<32x4xf32>, vector<4x128xf32>, vector<32x128xf32> -> vector<32x128xf32>
    %9 = vector.broadcast %5 : vector<32x1xf32> to vector<32x128xf32>
    %10 = arith.addf %8, %9 : vector<32x128xf32>
    %cst_7 = arith.constant 0.000000e+00 : f32
    %11 = vector.broadcast %cst_7 : f32 to vector<32x128xf32>
    %12 = arith.maximumf %10, %11 : vector<32x128xf32>
    %cst_8 = arith.constant dense<0.000000e+00> : vector<32xf32>
    %13 = vector.multi_reduction <add>, %12, %cst_8 [1] : vector<32x128xf32> to vector<32xf32>
    %14 = vector.shape_cast %13 : vector<32xf32> to vector<1x32xf32>
    %15 = vector.extract_strided_slice %3 {offsets = [1, 0, 0], sizes = [1, 4, 128], strides = [1, 1, 1]} : vector<2x4x128xf32> to vector<1x4x128xf32>
    %16 = vector.shape_cast %15 : vector<1x4x128xf32> to vector<4x128xf32>
    %cst_9 = arith.constant dense<0.000000e+00> : vector<32x128xf32>
    %17 = tpu.matmul %4, %16, %cst_9 {dimension_numbers = #tpu.dot_dimension_numbers<[1], [0], [0], [1], [0, 0, 1, 1], [], []>} : vector<32x4xf32>, vector<4x128xf32>, vector<32x128xf32> -> vector<32x128xf32>
    %18 = vector.broadcast %5 : vector<32x1xf32> to vector<32x128xf32>
    %19 = arith.addf %17, %18 : vector<32x128xf32>
    %cst_10 = arith.constant 0.000000e+00 : f32
    %20 = vector.broadcast %cst_10 : f32 to vector<32x128xf32>
    %21 = arith.maximumf %19, %20 : vector<32x128xf32>
    %cst_11 = arith.constant dense<0.000000e+00> : vector<32xf32>
    %22 = vector.multi_reduction <add>, %21, %cst_11 [1] : vector<32x128xf32> to vector<32xf32>
    %23 = vector.shape_cast %22 : vector<32xf32> to vector<1x32xf32>
    %c0_12 = arith.constant 0 : index
    %c0_13 = arith.constant 0 : index
    %24 = vector.load %arg10[%c0_12, %c0_13] : memref<2x32xf32, #tpu.memory_space<vmem>>, vector<2x32xf32>
    %25 = tpu.concatenate %14, %23 in 0 : vector<1x32xf32>, vector<1x32xf32> -> vector<2x32xf32>
    %26 = arith.addf %24, %25 : vector<2x32xf32>
    %c0_14 = arith.constant 0 : index
    %c0_15 = arith.constant 0 : index
    %27 = vector.load %arg10[%c0_14, %c0_15] : memref<2x32xf32, #tpu.memory_space<vmem>>, vector<2x32xf32>
    tpu.vector_store %arg10[%c0_14, %c0_15], %26 {strides = array<i32>} : memref<2x32xf32, #tpu.memory_space<vmem>>, vector<2x32xf32>,
    %c1_i32 = arith.constant 1 : i32
    %28 = arith.cmpi eq, %arg1, %c1_i32 : i32
    %29 = arith.extui %28 : i1 to i32
    %c0_i32_16 = arith.constant 0 : i32
    %30 = arith.cmpi ne, %29, %c0_i32_16 : i32
    scf.if %30 {
      %c0_17 = arith.constant 0 : index
      %c0_18 = arith.constant 0 : index
      %31 = vector.load %arg10[%c0_17, %c0_18] : memref<2x32xf32, #tpu.memory_space<vmem>>, vector<2x32xf32>
      %cst_19 = arith.constant 3.906250e-03 : f32
      %32 = vector.broadcast %cst_19 : f32 to vector<2x32xf32>
      %33 = arith.mulf %31, %32 : vector<2x32xf32>
      %c0_20 = arith.constant 0 : index
      %c0_21 = arith.constant 0 : index
      %34 = vector.load %arg5[%c0_20, %c0_21] : memref<32x32xf32, #tpu.memory_space<vmem>>, vector<32x32xf32>
      %cst_22 = arith.constant dense<0.000000e+00> : vector<2x32xf32>
      %35 = tpu.matmul %33, %34, %cst_22 {dimension_numbers = #tpu.dot_dimension_numbers<[1], [0], [0], [1], [0, 0, 1, 1], [], []>} : vector<2x32xf32>, vector<32x32xf32>, vector<2x32xf32> -> vector<2x32xf32>
      %c0_23 = arith.constant 0 : index
      %c0_24 = arith.constant 0 : index
      %36 = vector.load %arg6[%c0_23, %c0_24] : memref<1x32xf32, #tpu.memory_space<vmem>>, vector<1x32xf32>
      %37 = vector.broadcast %36 : vector<1x32xf32> to vector<2x32xf32>
      %38 = arith.addf %35, %37 : vector<2x32xf32>
      %cst_25 = arith.constant 0.000000e+00 : f32
      %39 = vector.broadcast %cst_25 : f32 to vector<2x32xf32>
      %40 = arith.maximumf %38, %39 : vector<2x32xf32>
      %c0_26 = arith.constant 0 : index
      %c0_27 = arith.constant 0 : index
      %41 = vector.load %arg7[%c0_26, %c0_27] : memref<32x32xf32, #tpu.memory_space<vmem>>, vector<32x32xf32>
      %cst_28 = arith.constant dense<0.000000e+00> : vector<2x32xf32>
      %42 = tpu.matmul %40, %41, %cst_28 {dimension_numbers = #tpu.dot_dimension_numbers<[1], [0], [0], [1], [0, 0, 1, 1], [], []>} : vector<2x32xf32>, vector<32x32xf32>, vector<2x32xf32> -> vector<2x32xf32>
      %c0_29 = arith.constant 0 : index
      %c0_30 = arith.constant 0 : index
      %43 = vector.load %arg8[%c0_29, %c0_30] : memref<1x32xf32, #tpu.memory_space<vmem>>, vector<1x32xf32>
      %44 = vector.broadcast %43 : vector<1x32xf32> to vector<2x32xf32>
      %45 = arith.addf %42, %44 : vector<2x32xf32>
      %c0_31 = arith.constant 0 : index
      %c0_32 = arith.constant 0 : index
      %46 = vector.load %arg9[%c0_31, %c0_32] : memref<2x32xf32, #tpu.memory_space<vmem>>, vector<2x32xf32>
      tpu.vector_store %arg9[%c0_31, %c0_32], %45 {strides = array<i32>} : memref<2x32xf32, #tpu.memory_space<vmem>>, vector<2x32xf32>,
    } else {
    }
    return
  }
  func.func @transform_0(%arg0: i32, %arg1: i32) -> (i32, i32, i32) {
    %c0_i32 = arith.constant 0 : i32
    %c0_i32_0 = arith.constant 0 : i32
    return %arg0, %c0_i32, %arg1 : i32, i32, i32
  }
  func.func @transform_1(%arg0: i32, %arg1: i32) -> (i32, i32) {
    %c0_i32 = arith.constant 0 : i32
    %c0_i32_0 = arith.constant 0 : i32
    %c0_i32_1 = arith.constant 0 : i32
    return %c0_i32, %c0_i32_0 : i32, i32
  }
  func.func @transform_2(%arg0: i32, %arg1: i32) -> (i32, i32) {
    %c0_i32 = arith.constant 0 : i32
    %c0_i32_0 = arith.constant 0 : i32
    %c0_i32_1 = arith.constant 0 : i32
    return %c0_i32, %c0_i32_0 : i32, i32
  }
  func.func @transform_3(%arg0: i32, %arg1: i32) -> (i32, i32) {
    %c0_i32 = arith.constant 0 : i32
    %c0_i32_0 = arith.constant 0 : i32
    %c0_i32_1 = arith.constant 0 : i32
    return %c0_i32, %c0_i32_0 : i32, i32
  }
  func.func @transform_4(%arg0: i32, %arg1: i32) -> (i32, i32) {
    %c0_i32 = arith.constant 0 : i32
    %c0_i32_0 = arith.constant 0 : i32
    %c0_i32_1 = arith.constant 0 : i32
    return %c0_i32, %c0_i32_0 : i32, i32
  }
  func.func @transform_5(%arg0: i32, %arg1: i32) -> (i32, i32) {
    %c0_i32 = arith.constant 0 : i32
    %c0_i32_0 = arith.constant 0 : i32
    %c0_i32_1 = arith.constant 0 : i32
    return %c0_i32, %c0_i32_0 : i32, i32
  }
  func.func @transform_6(%arg0: i32, %arg1: i32) -> (i32, i32) {
    %c0_i32 = arith.constant 0 : i32
    %c0_i32_0 = arith.constant 0 : i32
    %c0_i32_1 = arith.constant 0 : i32
    return %c0_i32, %c0_i32_0 : i32, i32
  }
  func.func @transform_7(%arg0: i32, %arg1: i32) -> (i32, i32) {
    %c0_i32 = arith.constant 0 : i32
    %c0_i32_0 = arith.constant 0 : i32
    return %arg0, %c0_i32 : i32, i32
  }
}

</mosaic_0001>

<llo_original>
// kernel: tpu_custom_call.1
$region0: #{tpu_custom_call.1}
  #allocation0 [shape = 'u32[]', space=smem, size = 0x4, offset = 0x4, fixed_abs, tag = 'smem constant byte address 0x4 - core index']
  #allocation1 [shape = 'u32[144,128]{1,0:T(1,128)}', space=vmem, size = 0x12000, scoped, tag = 'internal scratch']
  #allocation2 [shape = 'f32[2,32]{1,0:T(2,128)}', space=vmem, size = 0x400, scoped, tag = 'scratch operand']
  %s0 = inlined_call_operand.hbm [shape: f32[2,4,256], index: 0, kind: input, shape index: {}]
  %s1 = inlined_call_operand.vmem [shape: f32[32,4], index: 1, kind: input, shape index: {}]
  %s2 = inlined_call_operand.vmem [shape: f32[32,1], index: 2, kind: input, shape index: {}]
  %s3 = inlined_call_operand.vmem [shape: f32[32,32], index: 3, kind: input, shape index: {}]
  %s4 = inlined_call_operand.vmem [shape: f32[1,32], index: 4, kind: input, shape index: {}]
  %s5 = inlined_call_operand.vmem [shape: f32[32,32], index: 5, kind: input, shape index: {}]
  %s6 = inlined_call_operand.vmem [shape: f32[1,32], index: 6, kind: input, shape index: {}]
  %s7 = inlined_call_operand.hbm [shape: f32[2,32], index: 7, kind: output, shape index: {}]
  %s8 = sld [smem:[#allocation0]]
  $region73: #{tpu_custom_call.1} parent=0
    _
  %s10 = ssub.s32 1, %s8
  %s11 = scalar_select 0, %s10, %s8
  $region1: #{tpu_custom_call.1} parent=0
    #allocation3 [shape = 'u8[8192]{0}', space=vmem, size = 0x2000, scoped, tag = 'input window, operand 0']
    #allocation4 [shape = 's32[2]{0}', space=sflag, size = 0x8, scoped, tag = 'scoped memory for tpu_custom_call.1']
    #allocation5 [shape = 's32[2]{0}', space=sflag, size = 0x8, scoped, tag = 'scoped memory for tpu_custom_call.1']
    #allocation6 [shape = 'u8[1024]{0}', space=vmem, size = 0x400, scoped, tag = 'output window, operand 0, single buffered']
    %12 = vsyncpa [#allocation4], 0
    %s13 = scalar_lea.sflag [#allocation4], 1
    %14 = vsyncpa %s13, 0
    %15 = vsyncpa [#allocation5], 0
    loop: start=0, step=1, limit=4
    $region2: #{tpu_custom_call.1} parent=1 // loop_pre_header
      _
    $region3: #{tpu_custom_call.1} parent=1 // loop_header
      %s17 = sphi 0, %s21
      %p18 = scmp.ge.s32.totalorder %s17, 4
      %s24 = sphi 0, %s36
      %s25 = sphi 0, %s32
      %s26 = sphi 0, %s24
      %s27 = sphi 0, %s25
      %s28 = sphi 0, %s26
      %s29 = sphi 0, %s27
      %s41 = sphi 0, %s43
      %s44 = sphi 0, %s41
      %s45 = sphi 0, %s44
      %s61 = sphi 0, %s45
      %s65 = sphi 0, %s65
      %s67 = sphi 0, %s65
      %s68 = sphi 0, %s67
      %s82 = sphi 0, %s68
      %s86 = sphi 0, %s86
      %s88 = sphi 0, %s86
      %s89 = sphi 0, %s88
      %s103 = sphi 0, %s89
      %s107 = sphi 0, %s107
      %s109 = sphi 0, %s107
      %s110 = sphi 0, %s109
      %s124 = sphi 0, %s110
      %s128 = sphi 0, %s128
      %s130 = sphi 0, %s128
      %s131 = sphi 0, %s130
      %s145 = sphi 0, %s131
      %s149 = sphi 0, %s149
      %s151 = sphi 0, %s149
      %s152 = sphi 0, %s151
      %s166 = sphi 0, %s152
      %s170 = sphi 0, %s170
      %s172 = sphi 0, %s170
      %s173 = sphi 0, %s172
      %s187 = sphi 0, %s173
      %s193 = sphi 0, %s195
      %s196 = sphi 0, %s193
      %s197 = sphi 0, %s196
      %s213 = sphi 0, %s197
    $region4: #{tpu_custom_call.1} parent=1 // loop_header_branch
      %20 = sbr.rel (%p18) target = $region8
    $region5: #{tpu_custom_call.1} parent=1 // loop_body
      %s22 = ssub.s32 %s17, 1
      %s23 = ssub.s32 %s17, 2
      %s30 = sadd.s32 1, %s25
      %p31 = scmp.ge.s32.totalorder %s30, 2
      %s32 = scalar_select %p31, 0, %s30
      %s33 = sadd.s32 1, %s24
      %s34 = scalar_select %p31, %s33, %s24
      %p35 = scmp.ge.s32.totalorder %s34, 1
      %s36 = scalar_select %p35, 0, %s34
      %s37 = ssub.s32 %s24, %s36
      %s38 = ssub.s32 %s25, %s32
      %s39 = sor.u32 %s37, %s38
      %p40 = scmp.eq.s32.totalorder %s39, 0
      %s42 = sadd.s32 %s41, 1
      %s43 = scalar_select %p40, %s41, %s42
      %p46 = pneg %p40
      %p47 = scmp.eq.s32.totalorder %s17, 1
      %p48 = por %p46, %p47
      %p49 = scmp.ne.s32.totalorder %s41, %s44
      %p50 = scmp.eq.s32.totalorder %s17, 0
      %p51 = por %p49, %p50
      %p52 = scmp.ne.s32.totalorder %s41, %s44
      %p53 = scmp.eq.s32.totalorder %s22, 1
      %p54 = por %p52, %p53
      %p55 = scmp.ne.s32.totalorder %s44, %s45
      %p56 = scmp.eq.s32.totalorder %s22, 0
      %p57 = por %p55, %p56
      %p58 = scmp.ne.s32.totalorder %s44, %s45
      %p59 = scmp.eq.s32.totalorder %s23, 1
      %p60 = por %p58, %p59
      %p62 = scmp.ne.s32.totalorder %s45, %s61
      %p63 = scmp.eq.s32.totalorder %s23, 0
      %p64 = por %p62, %p63
      %s66 = sadd.s32 %s65, 1
      %p69 = scmp.eq.s32.totalorder %s17, 1
      %p70 = scmp.ne.s32.totalorder %s65, %s67
      %p71 = scmp.eq.s32.totalorder %s17, 0
      %p72 = por %p70, %p71
      %p73 = scmp.ne.s32.totalorder %s65, %s67
      %p74 = scmp.eq.s32.totalorder %s22, 1
      %p75 = por %p73, %p74
      %p76 = scmp.ne.s32.totalorder %s67, %s68
      %p77 = scmp.eq.s32.totalorder %s22, 0
      %p78 = por %p76, %p77
      %p79 = scmp.ne.s32.totalorder %s67, %s68
      %p80 = scmp.eq.s32.totalorder %s23, 1
      %p81 = por %p79, %p80
      %p83 = scmp.ne.s32.totalorder %s68, %s82
      %p84 = scmp.eq.s32.totalorder %s23, 0
      %p85 = por %p83, %p84
      %s87 = sadd.s32 %s86, 1
      %p90 = scmp.eq.s32.totalorder %s17, 1
      %p91 = scmp.ne.s32.totalorder %s86, %s88
      %p92 = scmp.eq.s32.totalorder %s17, 0
      %p93 = por %p91, %p92
      %p94 = scmp.ne.s32.totalorder %s86, %s88
      %p95 = scmp.eq.s32.totalorder %s22, 1
      %p96 = por %p94, %p95
      %p97 = scmp.ne.s32.totalorder %s88, %s89
      %p98 = scmp.eq.s32.totalorder %s22, 0
      %p99 = por %p97, %p98
      %p100 = scmp.ne.s32.totalorder %s88, %s89
      %p101 = scmp.eq.s32.totalorder %s23, 1
      %p102 = por %p100, %p101
      %p104 = scmp.ne.s32.totalorder %s89, %s103
      %p105 = scmp.eq.s32.totalorder %s23, 0
      %p106 = por %p104, %p105
      %s108 = sadd.s32 %s107, 1
      %p111 = scmp.eq.s32.totalorder %s17, 1
      %p112 = scmp.ne.s32.totalorder %s107, %s109
      %p113 = scmp.eq.s32.totalorder %s17, 0
      %p114 = por %p112, %p113
      %p115 = scmp.ne.s32.totalorder %s107, %s109
      %p116 = scmp.eq.s32.totalorder %s22, 1
      %p117 = por %p115, %p116
      %p118 = scmp.ne.s32.totalorder %s109, %s110
      %p119 = scmp.eq.s32.totalorder %s22, 0
      %p120 = por %p118, %p119
      %p121 = scmp.ne.s32.totalorder %s109, %s110
      %p122 = scmp.eq.s32.totalorder %s23, 1
      %p123 = por %p121, %p122
      %p125 = scmp.ne.s32.totalorder %s110, %s124
      %p126 = scmp.eq.s32.totalorder %s23, 0
      %p127 = por %p125, %p126
      %s129 = sadd.s32 %s128, 1
      %p132 = scmp.eq.s32.totalorder %s17, 1
      %p133 = scmp.ne.s32.totalorder %s128, %s130
      %p134 = scmp.eq.s32.totalorder %s17, 0
      %p135 = por %p133, %p134
      %p136 = scmp.ne.s32.totalorder %s128, %s130
      %p137 = scmp.eq.s32.totalorder %s22, 1
      %p138 = por %p136, %p137
      %p139 = scmp.ne.s32.totalorder %s130, %s131
      %p140 = scmp.eq.s32.totalorder %s22, 0
      %p141 = por %p139, %p140
      %p142 = scmp.ne.s32.totalorder %s130, %s131
      %p143 = scmp.eq.s32.totalorder %s23, 1
      %p144 = por %p142, %p143
      %p146 = scmp.ne.s32.totalorder %s131, %s145
      %p147 = scmp.eq.s32.totalorder %s23, 0
      %p148 = por %p146, %p147
      %s150 = sadd.s32 %s149, 1
      %p153 = scmp.eq.s32.totalorder %s17, 1
      %p154 = scmp.ne.s32.totalorder %s149, %s151
      %p155 = scmp.eq.s32.totalorder %s17, 0
      %p156 = por %p154, %p155
      %p157 = scmp.ne.s32.totalorder %s149, %s151
      %p158 = scmp.eq.s32.totalorder %s22, 1
      %p159 = por %p157, %p158
      %p160 = scmp.ne.s32.totalorder %s151, %s152
      %p161 = scmp.eq.s32.totalorder %s22, 0
      %p162 = por %p160, %p161
      %p163 = scmp.ne.s32.totalorder %s151, %s152
      %p164 = scmp.eq.s32.totalorder %s23, 1
      %p165 = por %p163, %p164
      %p167 = scmp.ne.s32.totalorder %s152, %s166
      %p168 = scmp.eq.s32.totalorder %s23, 0
      %p169 = por %p167, %p168
      %s171 = sadd.s32 %s170, 1
      %p174 = scmp.eq.s32.totalorder %s17, 1
      %p175 = scmp.ne.s32.totalorder %s170, %s172
      %p176 = scmp.eq.s32.totalorder %s17, 0
      %p177 = por %p175, %p176
      %p178 = scmp.ne.s32.totalorder %s170, %s172
      %p179 = scmp.eq.s32.totalorder %s22, 1
      %p180 = por %p178, %p179
      %p181 = scmp.ne.s32.totalorder %s172, %s173
      %p182 = scmp.eq.s32.totalorder %s22, 0
      %p183 = por %p181, %p182
      %p184 = scmp.ne.s32.totalorder %s172, %s173
      %p185 = scmp.eq.s32.totalorder %s23, 1
      %p186 = por %p184, %p185
      %p188 = scmp.ne.s32.totalorder %s173, %s187
      %p189 = scmp.eq.s32.totalorder %s23, 0
      %p190 = por %p188, %p189
      %s191 = ssub.s32 %s24, %s36
      %p192 = scmp.eq.s32.totalorder %s191, 0
      %s194 = sadd.s32 %s193, 1
      %s195 = scalar_select %p192, %s193, %s194
      %p198 = pneg %p192
      %p199 = scmp.eq.s32.totalorder %s17, 1
      %p200 = por %p198, %p199
      %p201 = scmp.ne.s32.totalorder %s193, %s196
      %p202 = scmp.eq.s32.totalorder %s17, 0
      %p203 = por %p201, %p202
      %p204 = scmp.ne.s32.totalorder %s193, %s196
      %p205 = scmp.eq.s32.totalorder %s22, 1
      %p206 = por %p204, %p205
      %p207 = scmp.ne.s32.totalorder %s196, %s197
      %p208 = scmp.eq.s32.totalorder %s22, 0
      %p209 = por %p207, %p208
      %p210 = scmp.ne.s32.totalorder %s196, %s197
      %p211 = scmp.eq.s32.totalorder %s23, 1
      %p212 = por %p210, %p211
      %p214 = scmp.ne.s32.totalorder %s197, %s213
      %p215 = scmp.eq.s32.totalorder %s23, 0
      %p216 = por %p214, %p215
      %p217 = scmp.le.s32.totalorder 1, %s17
      %p218 = scmp.lt.s32.totalorder %s17, 3
      %p219 = pnand %p217, %p218
      %p220 = pneg %p219
      // Predicated region
      $region9: #{tpu_custom_call.1} parent=5 // pred_check
        _
      $region10: #{tpu_custom_call.1} parent=5 // pred_check_branch
        %222 = sbr.rel (%p219) target = $region12
      $region11: #{tpu_custom_call.1} parent=5 // pred_region
        %s223 = ssub.s32 %s17, 1
        // Predicated region
        $region13: #{tpu_custom_call.1} parent=11 // pred_check
          %p224 = pneg %p78
        $region14: #{tpu_custom_call.1} parent=11 // pred_check_branch
          %226 = sbr.rel (%p224) target = $region16
        $region15: #{tpu_custom_call.1} parent=11 // pred_region
          _
        $region16: #{tpu_custom_call.1} parent=11 // pred_fallthru
          _
        // Predicated region
        $region17: #{tpu_custom_call.1} parent=11 // pred_check
          %p227 = pneg %p99
        $region18: #{tpu_custom_call.1} parent=11 // pred_check_branch
          %229 = sbr.rel (%p227) target = $region20
        $region19: #{tpu_custom_call.1} parent=11 // pred_region
          _
        $region20: #{tpu_custom_call.1} parent=11 // pred_fallthru
          _
        // Predicated region
        $region21: #{tpu_custom_call.1} parent=11 // pred_check
          %p230 = pneg %p120
        $region22: #{tpu_custom_call.1} parent=11 // pred_check_branch
          %232 = sbr.rel (%p230) target = $region24
        $region23: #{tpu_custom_call.1} parent=11 // pred_region
          _
        $region24: #{tpu_custom_call.1} parent=11 // pred_fallthru
          _
        // Predicated region
        $region25: #{tpu_custom_call.1} parent=11 // pred_check
          %p233 = pneg %p141
        $region26: #{tpu_custom_call.1} parent=11 // pred_check_branch
          %235 = sbr.rel (%p233) target = $region28
        $region27: #{tpu_custom_call.1} parent=11 // pred_region
          _
        $region28: #{tpu_custom_call.1} parent=11 // pred_fallthru
          _
        // Predicated region
        $region29: #{tpu_custom_call.1} parent=11 // pred_check
          %p236 = pneg %p162
        $region30: #{tpu_custom_call.1} parent=11 // pred_check_branch
          %238 = sbr.rel (%p236) target = $region32
        $region31: #{tpu_custom_call.1} parent=11 // pred_region
          _
        $region32: #{tpu_custom_call.1} parent=11 // pred_fallthru
          _
        // Predicated region
        $region33: #{tpu_custom_call.1} parent=11 // pred_check
          %p239 = pneg %p183
        $region34: #{tpu_custom_call.1} parent=11 // pred_check_branch
          %241 = sbr.rel (%p239) target = $region36
        $region35: #{tpu_custom_call.1} parent=11 // pred_region
          _
        $region36: #{tpu_custom_call.1} parent=11 // pred_fallthru
          _
      $region12: #{tpu_custom_call.1} parent=5 // pred_fallthru
        _
      %p242 = scmp.lt.s32.totalorder %s17, 2
      // Predicated region
      $region37: #{tpu_custom_call.1} parent=5 // pred_check
        %p243 = pneg %p242
      $region38: #{tpu_custom_call.1} parent=5 // pred_check_branch
        %245 = sbr.rel (%p243) target = $region40
      $region39: #{tpu_custom_call.1} parent=5 // pred_region
        // Predicated region
        $region41: #{tpu_custom_call.1} parent=39 // pred_check
          %p246 = pneg %p51
        $region42: #{tpu_custom_call.1} parent=39 // pred_check_branch
          %248 = sbr.rel (%p246) target = $region44
        $region43: #{tpu_custom_call.1} parent=39 // pred_region
          %s249 = sand.u32 %s41, 1
          %s250 = scalar_lea.sflag [#allocation4], %s249
          %s251 = sand.u32 %s41, 1
          %s252 = smul.addr %s251, 8
          %s253 = scalar_lea.vmem [#allocation3], %s252
          %s254 = smul.u32 2, %s24
          %s256 = ssub.s32 128, 128
          %257 = vsyncadd %s250, %s256
          %s258 = smul.addr %s254, 2
          %s259 = sadd.s32 %s25, %s258
          %s260 = smul.addr %s259, 64
          %s261 = scalar_lea.hbm %s0, %s260
          %s262 = sshll.u32 %s253, 4
          %s263 = int_to_ptr.vmem [resolvable:$true] %s262
          %268 = dma.hbm_to_vmem [thread:$0]  %s261, 128, %s263, %s250, 128, 64, 4
        $region44: #{tpu_custom_call.1} parent=39 // pred_fallthru
          _
      $region40: #{tpu_custom_call.1} parent=5 // pred_fallthru
        _
      %p269 = scmp.le.s32.totalorder 1, %s17
      %p270 = scmp.lt.s32.totalorder %s17, 3
      %p271 = pnand %p269, %p270
      %p272 = pneg %p271
      // Predicated region
      $region45: #{tpu_custom_call.1} parent=5 // pred_check
        _
      $region46: #{tpu_custom_call.1} parent=5 // pred_check_branch
        %274 = sbr.rel (%p271) target = $region48
      $region47: #{tpu_custom_call.1} parent=5 // pred_region
        %s275 = ssub.s32 %s17, 1
        %s276 = sand.u32 %s44, 1
        %s277 = scalar_lea.sflag [#allocation4], %s276
        %s278 = sand.u32 %s44, 1
        %s279 = smul.addr %s278, 8
        %s280 = scalar_lea.vmem [#allocation3], %s279
        // Predicated region
        $region49: #{tpu_custom_call.1} parent=47 // pred_check
          %p281 = pneg %p57
        $region50: #{tpu_custom_call.1} parent=47 // pred_check_branch
          %283 = sbr.rel (%p281) target = $region52
        $region51: #{tpu_custom_call.1} parent=47 // pred_region
          %284 = dma.done %s277, 128
        $region52: #{tpu_custom_call.1} parent=47 // pred_fallthru
          _
        %s285 = sand.u32 %s44, 1
        %s286 = scalar_lea.sflag [#allocation4], %s285
        %s287 = sand.u32 %s44, 1
        %s288 = smul.addr %s287, 8
        %s289 = scalar_lea.vmem [#allocation3], %s288
        %p290 = pneg %p57
        %p291 = pneg %p54
        %p292 = pneg %p78
        %p293 = pneg %p75
        %p294 = pneg %p99
        %p295 = pneg %p96
        %p296 = pneg %p120
        %p297 = pneg %p117
        %p298 = pneg %p141
        %p299 = pneg %p138
        %p300 = pneg %p162
        %p301 = pneg %p159
        %p302 = pneg %p183
        %p303 = pneg %p180
        %p304 = pneg %p209
        %p305 = pneg %p206
        %s306 = smul.u32 2, %s26
        %p307 = scmp.eq.s32.totalorder %s27, 0
        // Predicated region
        $region53: #{tpu_custom_call.1} parent=47 // pred_check
          %p308 = pneg %p307
        $region54: #{tpu_custom_call.1} parent=47 // pred_check_branch
          %310 = sbr.rel (%p308) target = $region56
        $region55: #{tpu_custom_call.1} parent=47 // pred_region
          %vm311 = vcmask 254976
          %312 = vst.msk [vmem:[#allocation2] sm:$0x3] %vm311, 0.0
        $region56: #{tpu_custom_call.1} parent=47 // pred_fallthru
          _
        %v313 = vld [vmem:[%s280] sm:$0xf]
        %v314 = vld [vmem:[%s280 + $0x4] sm:$0xf]
        %v315 = vld [vmem:[%s1] sm:$0xff]
        %v316 = vld [vmem:[%s1 + $0x8] sm:$0xff]
        %v317 = vld [vmem:[%s1 + $0x10] sm:$0xff]
        %v318 = vld [vmem:[%s1 + $0x18] sm:$0xff]
        %v319 = vld [vmem:[%s2] sm:$0xff]
        %v320 = vld [vmem:[%s2 + $0x8] sm:$0xff]
        %v321 = vld [vmem:[%s2 + $0x10] sm:$0xff]
        %v322 = vld [vmem:[%s2 + $0x18] sm:$0xff]
        %324 = vset.pattern.permute.xlu0 0
        %325 = vperm.xlu0 %324, %v319
        %v326 = vpop.permute.xlu0 %325
        %329 = vset.pattern.permute.xlu0 0
        %330 = vperm.xlu0 %329, %v320
        %v331 = vpop.permute.xlu0 %330
        %334 = vset.pattern.permute.xlu0 0
        %335 = vperm.xlu0 %334, %v321
        %v336 = vpop.permute.xlu0 %335
        %339 = vset.pattern.permute.xlu0 0
        %340 = vperm.xlu0 %339, %v322
        %v341 = vpop.permute.xlu0 %340
        %vm343 = vcmask 31744
        %v345 = vsel %vm343, %v315, 0
        %v348 = vsel %vm343, %v316, 0
        %v351 = vsel %vm343, %v317, 0
        %v354 = vsel %vm343, %v318, 0
        %vm356 = vcmask 1043456
        %v358 = vsel %vm356, %v313, 0
        %360 = vmatprep.subr.mxu0 0.0
        %361 = vmatpush1.msra.mxu0 0.0
        %362 = vmatprep.subr.mxu0 0.0
        %363 = vmatpush1.msra.mxu0 0.0
        %364 = vmatprep.subr.mxu0 0.0
        %365 = vmatpush1.msra.mxu0 0.0
        %366 = vmatprep.subr.mxu0 0.0
        %367 = vmatpush1.msra.mxu0 0.0
        %368 = vmatprep.subr.mxu0 0.0
        %369 = vmatpush1.msra.mxu0 0.0
        %370 = vmatprep.subr.mxu0 0.0
        %371 = vmatpush1.msra.mxu0 0.0
        %372 = vmatprep.subr.mxu0 0.0
        %373 = vmatpush1.msra.mxu0 0.0
        %374 = vmatprep.subr.mxu0 0.0
        %375 = vmatpush1.msra.mxu0 0.0
        %376 = vmatprep.subr.mxu0 0.0
        %377 = vmatpush1.msra.mxu0 0.0
        %378 = vmatprep.subr.mxu0 0.0
        %379 = vmatpush1.msra.mxu0 0.0
        %380 = vmatprep.subr.mxu0 0.0
        %381 = vmatpush1.msra.mxu0 0.0
        %382 = vmatprep.subr.mxu0 0.0
        %383 = vmatpush1.msra.mxu0 0.0
        %384 = vmatprep.subr.mxu0 0.0
        %385 = vmatpush1.msra.mxu0 0.0
        %386 = vmatprep.subr.mxu0 0.0
        %387 = vmatpush1.msra.mxu0 0.0
        %388 = vmatprep.subr.mxu0 0.0
        %389 = vmatpush1.msra.mxu0 0.0
        %390 = vmatprep.subr.mxu0 0.0
        %391 = vmatpush1.msra.mxu0 %v358
        %392 = vmatprep.subr.mxu0 0.0
        %393 = vmatpush2.msra.mxu0 0.0
        %394 = vmatprep.subr.mxu0 0.0
        %395 = vmatpush2.msra.mxu0 0.0
        %396 = vmatprep.subr.mxu0 0.0
        %397 = vmatpush2.msra.mxu0 0.0
        %398 = vmatprep.subr.mxu0 0.0
        %399 = vmatpush2.msra.mxu0 0.0
        %400 = vmatprep.subr.mxu0 0.0
        %401 = vmatpush2.msra.mxu0 0.0
        %402 = vmatprep.subr.mxu0 0.0
        %403 = vmatpush2.msra.mxu0 0.0
        %404 = vmatprep.subr.mxu0 0.0
        %405 = vmatpush2.msra.mxu0 0.0
        %406 = vmatprep.subr.mxu0 0.0
        %407 = vmatpush2.msra.mxu0 0.0
        %408 = vmatprep.subr.mxu0 0.0
        %409 = vmatpush2.msra.mxu0 0.0
        %410 = vmatprep.subr.mxu0 0.0
        %411 = vmatpush2.msra.mxu0 0.0
        %412 = vmatprep.subr.mxu0 0.0
        %413 = vmatpush2.msra.mxu0 0.0
        %414 = vmatprep.subr.mxu0 0.0
        %415 = vmatpush2.msra.mxu0 0.0
        %416 = vmatprep.subr.mxu0 0.0
        %417 = vmatpush2.msra.mxu0 0.0
        %418 = vmatprep.subr.mxu0 0.0
        %419 = vmatpush2.msra.mxu0 0.0
        %420 = vmatprep.subr.mxu0 0.0
        %421 = vmatpush2.msra.mxu0 0.0
        %422 = vmatprep.subr.mxu0 0.0
        %423 = vmatpush2.msra.mxu0 0.0
        %424 = vmatprep.mubr.f32.mxu0 0.0
        %425 = vmatmul.mubr.f32.gmra.mxu0 %v345
        %v426 = vpop.f32.mrf.mxu0
        %v427 = vadd.f32 %v326, %v426
        %v428 = vpop.f32.mrf.mxu0
        %429 = vmatprep.mubr.f32.mxu0 0.0
        %430 = vmatmul.mubr.f32.gmra.mxu0 %v348
        %v431 = vpop.f32.mrf.mxu0
        %v432 = vadd.f32 %v331, %v431
        %v433 = vpop.f32.mrf.mxu0
        %434 = vmatprep.mubr.f32.mxu0 0.0
        %435 = vmatmul.mubr.f32.gmra.mxu0 %v351
        %v436 = vpop.f32.mrf.mxu0
        %v437 = vadd.f32 %v336, %v436
        %v438 = vpop.f32.mrf.mxu0
        %439 = vmatprep.mubr.f32.mxu0 0.0
        %440 = vmatmul.mubr.f32.gmra.mxu0 %v354
        %v441 = vpop.f32.mrf.mxu0
        %v442 = vadd.f32 %v341, %v441
        %v443 = vpop.f32.mrf.mxu0
        %444 = vdwg.mxu0
        %v445 = vmax.f32 %v427, 0.0
        %v446 = vmax.f32 %v432, 0.0
        %v447 = vmax.f32 %v437, 0.0
        %v448 = vmax.f32 %v442, 0.0
        %449 = vadd.xlane.f32.xlu0 %v445
        %v450 = vpop.xlane.xlu0 %449
        %451 = vadd.xlane.f32.xlu0 %v446
        %v452 = vpop.xlane.xlu0 %451
        %453 = vadd.xlane.f32.xlu0 %v447
        %v454 = vpop.xlane.xlu0 %453
        %455 = vadd.xlane.f32.xlu0 %v448
        %v456 = vpop.xlane.xlu0 %455
        %v458 = vsel %vm356, %v314, 0
        %460 = vmatprep.subr.mxu0 0.0
        %461 = vmatpush1.msra.mxu0 0.0
        %462 = vmatprep.subr.mxu0 0.0
        %463 = vmatpush1.msra.mxu0 0.0
        %464 = vmatprep.subr.mxu0 0.0
        %465 = vmatpush1.msra.mxu0 0.0
        %466 = vmatprep.subr.mxu0 0.0
        %467 = vmatpush1.msra.mxu0 0.0
        %468 = vmatprep.subr.mxu0 0.0
        %469 = vmatpush1.msra.mxu0 0.0
        %470 = vmatprep.subr.mxu0 0.0
        %471 = vmatpush1.msra.mxu0 0.0
        %472 = vmatprep.subr.mxu0 0.0
        %473 = vmatpush1.msra.mxu0 0.0
        %474 = vmatprep.subr.mxu0 0.0
        %475 = vmatpush1.msra.mxu0 0.0
        %476 = vmatprep.subr.mxu0 0.0
        %477 = vmatpush1.msra.mxu0 0.0
        %478 = vmatprep.subr.mxu0 0.0
        %479 = vmatpush1.msra.mxu0 0.0
        %480 = vmatprep.subr.mxu0 0.0
        %481 = vmatpush1.msra.mxu0 0.0
        %482 = vmatprep.subr.mxu0 0.0
        %483 = vmatpush1.msra.mxu0 0.0
        %484 = vmatprep.subr.mxu0 0.0
        %485 = vmatpush1.msra.mxu0 0.0
        %486 = vmatprep.subr.mxu0 0.0
        %487 = vmatpush1.msra.mxu0 0.0
        %488 = vmatprep.subr.mxu0 0.0
        %489 = vmatpush1.msra.mxu0 0.0
        %490 = vmatprep.subr.mxu0 0.0
        %491 = vmatpush1.msra.mxu0 %v458
        %492 = vmatprep.subr.mxu0 0.0
        %493 = vmatpush2.msra.mxu0 0.0
        %494 = vmatprep.subr.mxu0 0.0
        %495 = vmatpush2.msra.mxu0 0.0
        %496 = vmatprep.subr.mxu0 0.0
        %497 = vmatpush2.msra.mxu0 0.0
        %498 = vmatprep.subr.mxu0 0.0
        %499 = vmatpush2.msra.mxu0 0.0
        %500 = vmatprep.subr.mxu0 0.0
        %501 = vmatpush2.msra.mxu0 0.0
        %502 = vmatprep.subr.mxu0 0.0
        %503 = vmatpush2.msra.mxu0 0.0
        %504 = vmatprep.subr.mxu0 0.0
        %505 = vmatpush2.msra.mxu0 0.0
        %506 = vmatprep.subr.mxu0 0.0
        %507 = vmatpush2.msra.mxu0 0.0
        %508 = vmatprep.subr.mxu0 0.0
        %509 = vmatpush2.msra.mxu0 0.0
        %510 = vmatprep.subr.mxu0 0.0
        %511 = vmatpush2.msra.mxu0 0.0
        %512 = vmatprep.subr.mxu0 0.0
        %513 = vmatpush2.msra.mxu0 0.0
        %514 = vmatprep.subr.mxu0 0.0
        %515 = vmatpush2.msra.mxu0 0.0
        %516 = vmatprep.subr.mxu0 0.0
        %517 = vmatpush2.msra.mxu0 0.0
        %518 = vmatprep.subr.mxu0 0.0
        %519 = vmatpush2.msra.mxu0 0.0
        %520 = vmatprep.subr.mxu0 0.0
        %521 = vmatpush2.msra.mxu0 0.0
        %522 = vmatprep.subr.mxu0 0.0
        %523 = vmatpush2.msra.mxu0 0.0
        %524 = vmatprep.mubr.f32.mxu0 0.0
        %525 = vmatmul.mubr.f32.gmra.mxu0 %v345
        %v526 = vpop.f32.mrf.mxu0
        %v527 = vadd.f32 %v326, %v526
        %v528 = vpop.f32.mrf.mxu0
        %529 = vmatprep.mubr.f32.mxu0 0.0
        %530 = vmatmul.mubr.f32.gmra.mxu0 %v348
        %v531 = vpop.f32.mrf.mxu0
        %v532 = vadd.f32 %v331, %v531
        %v533 = vpop.f32.mrf.mxu0
        %534 = vmatprep.mubr.f32.mxu0 0.0
        %535 = vmatmul.mubr.f32.gmra.mxu0 %v351
        %v536 = vpop.f32.mrf.mxu0
        %v537 = vadd.f32 %v336, %v536
        %v538 = vpop.f32.mrf.mxu0
        %539 = vmatprep.mubr.f32.mxu0 0.0
        %540 = vmatmul.mubr.f32.gmra.mxu0 %v354
        %v541 = vpop.f32.mrf.mxu0
        %v542 = vadd.f32 %v341, %v541
        %v543 = vpop.f32.mrf.mxu0
        %544 = vdwg.mxu0
        %v545 = vmax.f32 %v527, 0.0
        %v546 = vmax.f32 %v532, 0.0
        %v547 = vmax.f32 %v537, 0.0
        %v548 = vmax.f32 %v542, 0.0
        %549 = vadd.xlane.f32.xlu0 %v545
        %v550 = vpop.xlane.xlu0 %549
        %551 = vadd.xlane.f32.xlu0 %v546
        %v552 = vpop.xlane.xlu0 %551
        %553 = vadd.xlane.f32.xlu0 %v547
        %v554 = vpop.xlane.xlu0 %553
        %555 = vadd.xlane.f32.xlu0 %v548
        %v556 = vpop.xlane.xlu0 %555
        %v557 = vld [vmem:[#allocation2] sm:$0x3]
        %v562 = vlaneseq
        %v563 = vand.u32 %v562, 127
        %v564 = vlaneseq
        %v565 = vshrl.u32 %v564, 7
        %v566 = vsub.s32 %v563, %v565
        %v567 = vrot.slane %v450, %v566
        %v568 = vadd.s32 %v563, 4294967288
        %v569 = vlaneseq
        %v570 = vshrl.u32 %v569, 7
        %v571 = vsub.s32 %v568, %v570
        %v572 = vrot.slane %v452, %v571
        %vm573 = vcmask 130112
        %v574 = vsel %vm573, %v572, %v567
        %v575 = vadd.s32 %v563, 4294967280
        %v576 = vlaneseq
        %v577 = vshrl.u32 %v576, 7
        %v578 = vsub.s32 %v575, %v577
        %v579 = vrot.slane %v454, %v578
        %vm580 = vcmask 195712
        %v581 = vsel %vm580, %v579, %v574
        %v582 = vadd.s32 %v563, 4294967272
        %v583 = vlaneseq
        %v584 = vshrl.u32 %v583, 7
        %v585 = vsub.s32 %v582, %v584
        %v586 = vrot.slane %v456, %v585
        %vm587 = vcmask 261312
        %v588 = vsel %vm587, %v586, %v581
        %v594 = vlaneseq
        %v595 = vshrl.u32 %v594, 7
        %v596 = vsub.s32 %v563, %v595
        %v597 = vrot.slane %v550, %v596
        %v598 = vlaneseq
        %v599 = vshrl.u32 %v598, 7
        %v600 = vsub.s32 %v568, %v599
        %v601 = vrot.slane %v552, %v600
        %v602 = vsel %vm573, %v601, %v597
        %v603 = vlaneseq
        %v604 = vshrl.u32 %v603, 7
        %v605 = vsub.s32 %v575, %v604
        %v606 = vrot.slane %v554, %v605
        %v607 = vsel %vm580, %v606, %v602
        %v608 = vlaneseq
        %v609 = vshrl.u32 %v608, 7
        %v610 = vsub.s32 %v582, %v609
        %v611 = vrot.slane %v556, %v610
        %v612 = vsel %vm587, %v611, %v607
        %vm614 = vcmask 1040384
        %v615 = vsel %vm614, %v588, %v612
        %v616 = vadd.f32 %v557, %v615
        %vm617 = vcmask 254976
        %618 = vst.msk [vmem:[#allocation2] sm:$0x3] %vm617, %v616
        %p619 = scmp.eq.s32.totalorder %s27, 1
        // Predicated region
        $region57: #{tpu_custom_call.1} parent=47 // pred_check
          %p620 = pneg %p619
        $region58: #{tpu_custom_call.1} parent=47 // pred_check_branch
          %622 = sbr.rel (%p620) target = $region60
        $region59: #{tpu_custom_call.1} parent=47 // pred_region
          %v623 = vld [vmem:[#allocation2] sm:$0x3]
          %v624 = vmul.f32 %v623, 0.00390625
          %v625 = vld [vmem:[%s3] sm:$0xff]
          %v626 = vld [vmem:[%s3 + $0x8] sm:$0xff]
          %v627 = vld [vmem:[%s3 + $0x10] sm:$0xff]
          %v628 = vld [vmem:[%s3 + $0x18] sm:$0xff]
          %v629 = vld [vmem:[%s4] sm:$0x1]
          %v631 = vlaneseq
          %v632 = vshrl.u32 %v631, 7
          %v633 = vsub.s32 0, %v632
          %v634 = vrot.slane %v629, %v633
          %vm636 = vcmask 261120
          %v638 = vsel %vm636, %v624, 0
          %640 = vmatprep.subr.mxu0 0.0
          %641 = vmatpush1.msra.mxu0 0.0
          %642 = vmatprep.subr.mxu0 0.0
          %643 = vmatpush1.msra.mxu0 0.0
          %644 = vmatprep.subr.mxu0 0.0
          %645 = vmatpush1.msra.mxu0 0.0
          %646 = vmatprep.subr.mxu0 0.0
          %647 = vmatpush1.msra.mxu0 0.0
          %648 = vmatprep.subr.mxu0 0.0
          %649 = vmatpush1.msra.mxu0 0.0
          %650 = vmatprep.subr.mxu0 0.0
          %651 = vmatpush1.msra.mxu0 0.0
          %652 = vmatprep.subr.mxu0 0.0
          %653 = vmatpush1.msra.mxu0 0.0
          %654 = vmatprep.subr.mxu0 0.0
          %655 = vmatpush1.msra.mxu0 0.0
          %656 = vmatprep.subr.mxu0 0.0
          %657 = vmatpush1.msra.mxu0 0.0
          %658 = vmatprep.subr.mxu0 0.0
          %659 = vmatpush1.msra.mxu0 0.0
          %660 = vmatprep.subr.mxu0 0.0
          %661 = vmatpush1.msra.mxu0 0.0
          %662 = vmatprep.subr.mxu0 0.0
          %663 = vmatpush1.msra.mxu0 0.0
          %664 = vmatprep.subr.mxu0 0.0
          %665 = vmatpush1.msra.mxu0 %v628
          %666 = vmatprep.subr.mxu0 0.0
          %667 = vmatpush1.msra.mxu0 %v627
          %668 = vmatprep.subr.mxu0 0.0
          %669 = vmatpush1.msra.mxu0 %v626
          %670 = vmatprep.subr.mxu0 0.0
          %671 = vmatpush1.msra.mxu0 %v625
          %672 = vmatprep.subr.mxu0 0.0
          %673 = vmatpush2.msra.mxu0 0.0
          %674 = vmatprep.subr.mxu0 0.0
          %675 = vmatpush2.msra.mxu0 0.0
          %676 = vmatprep.subr.mxu0 0.0
          %677 = vmatpush2.msra.mxu0 0.0
          %678 = vmatprep.subr.mxu0 0.0
          %679 = vmatpush2.msra.mxu0 0.0
          %680 = vmatprep.subr.mxu0 0.0
          %681 = vmatpush2.msra.mxu0 0.0
          %682 = vmatprep.subr.mxu0 0.0
          %683 = vmatpush2.msra.mxu0 0.0
          %684 = vmatprep.subr.mxu0 0.0
          %685 = vmatpush2.msra.mxu0 0.0
          %686 = vmatprep.subr.mxu0 0.0
          %687 = vmatpush2.msra.mxu0 0.0
          %688 = vmatprep.subr.mxu0 0.0
          %689 = vmatpush2.msra.mxu0 0.0
          %690 = vmatprep.subr.mxu0 0.0
          %691 = vmatpush2.msra.mxu0 0.0
          %692 = vmatprep.subr.mxu0 0.0
          %693 = vmatpush2.msra.mxu0 0.0
          %694 = vmatprep.subr.mxu0 0.0
          %695 = vmatpush2.msra.mxu0 0.0
          %696 = vmatprep.subr.mxu0 0.0
          %697 = vmatpush2.msra.mxu0 0.0
          %698 = vmatprep.subr.mxu0 0.0
          %699 = vmatpush2.msra.mxu0 0.0
          %700 = vmatprep.subr.mxu0 0.0
          %701 = vmatpush2.msra.mxu0 0.0
          %702 = vmatprep.subr.mxu0 0.0
          %703 = vmatpush2.msra.mxu0 0.0
          %704 = vmatprep.mubr.f32.mxu0 0.0
          %705 = vmatmul.mubr.f32.gmra.mxu0 %v638
          %v706 = vpop.f32.mrf.mxu0
          %v707 = vadd.f32 %v634, %v706
          %v708 = vpop.f32.mrf.mxu0
          %709 = vdwg.mxu0
          %v710 = vmax.f32 %v707, 0.0
          %v711 = vld [vmem:[%s5] sm:$0xff]
          %v712 = vld [vmem:[%s5 + $0x8] sm:$0xff]
          %v713 = vld [vmem:[%s5 + $0x10] sm:$0xff]
          %v714 = vld [vmem:[%s5 + $0x18] sm:$0xff]
          %v715 = vld [vmem:[%s6] sm:$0x1]
          %v717 = vlaneseq
          %v718 = vshrl.u32 %v717, 7
          %v719 = vsub.s32 0, %v718
          %v720 = vrot.slane %v715, %v719
          %v723 = vsel %vm636, %v710, 0
          %725 = vmatprep.subr.mxu0 0.0
          %726 = vmatpush1.msra.mxu0 0.0
          %727 = vmatprep.subr.mxu0 0.0
          %728 = vmatpush1.msra.mxu0 0.0
          %729 = vmatprep.subr.mxu0 0.0
          %730 = vmatpush1.msra.mxu0 0.0
          %731 = vmatprep.subr.mxu0 0.0
          %732 = vmatpush1.msra.mxu0 0.0
          %733 = vmatprep.subr.mxu0 0.0
          %734 = vmatpush1.msra.mxu0 0.0
          %735 = vmatprep.subr.mxu0 0.0
          %736 = vmatpush1.msra.mxu0 0.0
          %737 = vmatprep.subr.mxu0 0.0
          %738 = vmatpush1.msra.mxu0 0.0
          %739 = vmatprep.subr.mxu0 0.0
          %740 = vmatpush1.msra.mxu0 0.0
          %741 = vmatprep.subr.mxu0 0.0
          %742 = vmatpush1.msra.mxu0 0.0
          %743 = vmatprep.subr.mxu0 0.0
          %744 = vmatpush1.msra.mxu0 0.0
          %745 = vmatprep.subr.mxu0 0.0
          %746 = vmatpush1.msra.mxu0 0.0
          %747 = vmatprep.subr.mxu0 0.0
          %748 = vmatpush1.msra.mxu0 0.0
          %749 = vmatprep.subr.mxu0 0.0
          %750 = vmatpush1.msra.mxu0 %v714
          %751 = vmatprep.subr.mxu0 0.0
          %752 = vmatpush1.msra.mxu0 %v713
          %753 = vmatprep.subr.mxu0 0.0
          %754 = vmatpush1.msra.mxu0 %v712
          %755 = vmatprep.subr.mxu0 0.0
          %756 = vmatpush1.msra.mxu0 %v711
          %757 = vmatprep.subr.mxu0 0.0
          %758 = vmatpush2.msra.mxu0 0.0
          %759 = vmatprep.subr.mxu0 0.0
          %760 = vmatpush2.msra.mxu0 0.0
          %761 = vmatprep.subr.mxu0 0.0
          %762 = vmatpush2.msra.mxu0 0.0
          %763 = vmatprep.subr.mxu0 0.0
          %764 = vmatpush2.msra.mxu0 0.0
          %765 = vmatprep.subr.mxu0 0.0
          %766 = vmatpush2.msra.mxu0 0.0
          %767 = vmatprep.subr.mxu0 0.0
          %768 = vmatpush2.msra.mxu0 0.0
          %769 = vmatprep.subr.mxu0 0.0
          %770 = vmatpush2.msra.mxu0 0.0
          %771 = vmatprep.subr.mxu0 0.0
          %772 = vmatpush2.msra.mxu0 0.0
          %773 = vmatprep.subr.mxu0 0.0
          %774 = vmatpush2.msra.mxu0 0.0
          %775 = vmatprep.subr.mxu0 0.0
          %776 = vmatpush2.msra.mxu0 0.0
          %777 = vmatprep.subr.mxu0 0.0
          %778 = vmatpush2.msra.mxu0 0.0
          %779 = vmatprep.subr.mxu0 0.0
          %780 = vmatpush2.msra.mxu0 0.0
          %781 = vmatprep.subr.mxu0 0.0
          %782 = vmatpush2.msra.mxu0 0.0
          %783 = vmatprep.subr.mxu0 0.0
          %784 = vmatpush2.msra.mxu0 0.0
          %785 = vmatprep.subr.mxu0 0.0
          %786 = vmatpush2.msra.mxu0 0.0
          %787 = vmatprep.subr.mxu0 0.0
          %788 = vmatpush2.msra.mxu0 0.0
          %789 = vmatprep.mubr.f32.mxu0 0.0
          %790 = vmatmul.mubr.f32.gmra.mxu0 %v723
          %v791 = vpop.f32.mrf.mxu0
          %v792 = vadd.f32 %v720, %v791
          %v793 = vpop.f32.mrf.mxu0
          %794 = vdwg.mxu0
          %795 = vst.msk [vmem:[#allocation6] sm:$0x3] %vm617, %v792
        $region60: #{tpu_custom_call.1} parent=47 // pred_fallthru
          _
        // Predicated region
        $region61: #{tpu_custom_call.1} parent=47 // pred_check
          %p796 = pneg %p206
        $region62: #{tpu_custom_call.1} parent=47 // pred_check_branch
          %798 = sbr.rel (%p796) target = $region64
        $region63: #{tpu_custom_call.1} parent=47 // pred_region
          %s800 = ssub.s32 32, 32
          %801 = vsyncadd [#allocation5], %s800
          %s802 = smul.addr %s26, 32
          %s803 = scalar_lea.hbm %s7, %s802
          %s805 = sshll.u32 [#allocation6], 4
          %s806 = int_to_ptr.vmem [resolvable:$true] %s805
          %808 = dma.vmem_to_hbm [thread:$0]  %s806, 32, %s803, [#allocation5]
        $region64: #{tpu_custom_call.1} parent=47 // pred_fallthru
          _
        // Predicated region
        $region65: #{tpu_custom_call.1} parent=47 // pred_check
          %p809 = pneg %p206
        $region66: #{tpu_custom_call.1} parent=47 // pred_check_branch
          %811 = sbr.rel (%p809) target = $region68
        $region67: #{tpu_custom_call.1} parent=47 // pred_region
          %812 = dma.done [#allocation5], 32
        $region68: #{tpu_custom_call.1} parent=47 // pred_fallthru
          _
      $region48: #{tpu_custom_call.1} parent=5 // pred_fallthru
        _
      %p813 = scmp.le.s32.totalorder 2, %s17
      // Predicated region
      $region69: #{tpu_custom_call.1} parent=5 // pred_check
        %p814 = pneg %p813
      $region70: #{tpu_custom_call.1} parent=5 // pred_check_branch
        %816 = sbr.rel (%p814) target = $region72
      $region71: #{tpu_custom_call.1} parent=5 // pred_region
        %s817 = ssub.s32 %s17, 2
      $region72: #{tpu_custom_call.1} parent=5 // pred_fallthru
        _
    $region6: #{tpu_custom_call.1} parent=1 // loop_footer
      %s21 = sadd.s32 1, %s17
    $region7: #{tpu_custom_call.1} parent=1 // loop_footer_branch
      %16 = sbr.rel target = $region3
    $region8: #{tpu_custom_call.1} parent=1 // loop_exit
      _
    %818 = vsyncpa [#allocation4], 1
    %s819 = scalar_lea.sflag [#allocation4], 1
    %820 = vsyncpa %s819, 1
    %821 = vsyncpa [#allocation5], 1
    %s822 = scalar_lea.sflag [#allocation5], 1
    %823 = vsyncpa %s822, 1

</llo_original>
